<compile_context>
chip_gen: v7x
topology: tpu7x:2x2x1
jax: 0.10.0
libtpu: 0.0.40
codegen_flags: <defaults>
</compile_context>

<pallas_src>
import math
from types import SimpleNamespace

import jax
import jax.numpy as jnp
from jax import lax
from jax.experimental import pallas as pl
from jax.experimental.pallas import tpu as pltpu


def _sigmoid(x):
    # exp on the EUP + approx reciprocal keeps the divide off the VPU chain.
    return pl.reciprocal(1.0 + jnp.exp(-x), approx=True)


# ---------------------------------------------------------------------------
# Pallas kernel 1: exponential-smoothing recurrence (levels / seasonalities).
# TODO(synk): trend (no_trend=False) and additive-seasonality branches.
# TODO(synk): 8-row blocked writebacks + N-tiling (lane-dense) for large
#             num_series (required on v7x's 64 MiB VMEM).
# ---------------------------------------------------------------------------
def _es_kernel(xt_ref, levsm_ref, seassm_ref, initseas_ref,
               levs_ref, seas_ref):
    T = xt_ref.shape[0]
    seasonality = initseas_ref.shape[0]

    lev_sms = _sigmoid(levsm_ref[...])       # (1, N)
    seas_sms = _sigmoid(seassm_ref[...])     # (1, N)

    # initial seasonalities: exp(init[i]) for i < seasonality, then exp(init[0])
    e_init = jnp.exp(initseas_ref[...])                      # (seasonality, N)
    seas_ref[0:seasonality, :] = e_init
    seas0 = e_init[0:1, :]
    seas_ref[seasonality:seasonality + 1, :] = seas0

    lev0 = xt_ref[0:1, :] * pl.reciprocal(seas0, approx=True)
    levs_ref[0:1, :] = lev0

    def body(s, prev_lev):
        x_s = xt_ref[pl.ds(s, 1), :]
        seas_s = seas_ref[pl.ds(s, 1), :]
        x_deseas = x_s * pl.reciprocal(seas_s, approx=True)
        new_lev = lev_sms * x_deseas + (1.0 - lev_sms) * prev_lev
        levs_ref[pl.ds(s, 1), :] = new_lev
        seas_ref[pl.ds(s + seasonality, 1), :] = (
            seas_sms * (x_s * pl.reciprocal(new_lev, approx=True))
            + (1.0 - seas_sms) * seas_s)
        return new_lev

    lax.fori_loop(1, T, body, lev0)


def es_smoothing(xt_tm, lev_sms_raw, seas_sms_raw, init_seas_tm):
    T, N = xt_tm.shape
    seasonality = init_seas_tm.shape[0]
    out_shape = (
        jax.ShapeDtypeStruct((T, N), jnp.float32),                # levels
        jax.ShapeDtypeStruct((T + seasonality, N), jnp.float32),  # seasonalities
    )
    return pl.pallas_call(
        _es_kernel,
        out_shape=out_shape,
        grid_spec=pltpu.PrefetchScalarGridSpec(
            num_scalar_prefetch=0,
            grid=(1,),
            in_specs=[
                pl.BlockSpec((T, N), lambda i: (0, 0)),
                pl.BlockSpec((1, N), lambda i: (0, 0)),
                pl.BlockSpec((1, N), lambda i: (0, 0)),
                pl.BlockSpec((seasonality, N), lambda i: (0, 0)),
            ],
            out_specs=(
                pl.BlockSpec((T, N), lambda i: (0, 0)),
                pl.BlockSpec((T + seasonality, N), lambda i: (0, 0)),
            ),
        ),
        compiler_params=pltpu.CompilerParams(
            dimension_semantics=("arbitrary",)),
    )(xt_tm, lev_sms_raw, seas_sms_raw, init_seas_tm)


# ---------------------------------------------------------------------------
# Pallas kernel 2: fully-fused LSTM sequence. One kernel per layer: the whole
# (S, B, Din) slab sits in VMEM, weights are DMA'd once, h/c live in the
# fori_loop carry (vregs), and the gates use a single fused matmul with the
# pre-concatenated weight [w_ih; w_hh].
# Torch nn.LSTM semantics, gate order (i, f, g, o), zero initial state.
# TODO(synk): batch/stack phases to fill the 256-wide MXU if model is scaled.
# ---------------------------------------------------------------------------
def _lstm_seq_kernel(x_ref, w_ref, b_ref, out_ref):
    S, B, _ = x_ref.shape
    H = out_ref.shape[2]
    w = w_ref[...]                    # (Din + H, 4H) — loaded once
    b = b_ref[...]                    # (1, 4H)

    def step(s, carry):
        h, c = carry
        x_s = x_ref[s]                                        # (B, Din)
        xh = jnp.concatenate([x_s, h], axis=-1)               # (B, Din + H)
        gates = jnp.dot(xh, w, preferred_element_type=jnp.float32) + b
        i_g = _sigmoid(gates[:, 0:H])
        f_g = _sigmoid(gates[:, H:2 * H])
        g_g = jnp.tanh(gates[:, 2 * H:3 * H])
        o_g = _sigmoid(gates[:, 3 * H:4 * H])
        c_new = f_g * c + i_g * g_g
        h_new = o_g * jnp.tanh(c_new)
        out_ref[s] = h_new.astype(out_ref.dtype)
        return (h_new, c_new)

    zeros = jnp.zeros((B, H), jnp.float32)
    lax.fori_loop(0, S, step, (zeros, zeros))


def lstm_sequence(x, cell):
    S, B, Din = x.shape
    w_cat = cell['w_cat']                      # (Din + H, 4H)
    H = w_cat.shape[1] // 4
    return pl.pallas_call(
        _lstm_seq_kernel,
        out_shape=jax.ShapeDtypeStruct((S, B, H), jnp.float32),
        grid_spec=pltpu.PrefetchScalarGridSpec(
            num_scalar_prefetch=0,
            grid=(1,),
            in_specs=[
                pl.BlockSpec((S, B, Din), lambda i: (0, 0, 0)),
                pl.BlockSpec((Din + H, 4 * H), lambda i: (0, 0)),
                pl.BlockSpec((1, 4 * H), lambda i: (0, 0)),
            ],
            out_specs=pl.BlockSpec((S, B, H), lambda i: (0, 0, 0)),
        ),
        compiler_params=pltpu.CompilerParams(
            dimension_semantics=("arbitrary",)),
    )(x, w_cat, cell['b'])


# ---------------------------------------------------------------------------
# Pallas kernel 3: fused nl_layer + scoring  (x -> tanh(xW1+b1) -> W2 + b2).
# ---------------------------------------------------------------------------
def _mlp_kernel(x_ref, w1_ref, b1_ref, w2_ref, b2_ref, o_ref):
    h = jnp.tanh(jnp.dot(x_ref[...], w1_ref[...],
                         preferred_element_type=jnp.float32) + b1_ref[...])
    y = (jnp.dot(h, w2_ref[...], preferred_element_type=jnp.float32)
         + b2_ref[...])
    o_ref[...] = y.astype(o_ref.dtype)


def mlp_nl_scoring(x, nl, scoring):
    M, K = x.shape
    H = nl['w_t'].shape[1]
    Dout = scoring['w_t'].shape[1]
    return pl.pallas_call(
        _mlp_kernel,
        out_shape=jax.ShapeDtypeStruct((M, Dout), jnp.float32),
        grid_spec=pltpu.PrefetchScalarGridSpec(
            num_scalar_prefetch=0,
            grid=(1,),
            in_specs=[
                pl.BlockSpec((M, K), lambda i: (0, 0)),
                pl.BlockSpec((K, H), lambda i: (0, 0)),
                pl.BlockSpec((1, H), lambda i: (0, 0)),
                pl.BlockSpec((H, Dout), lambda i: (0, 0)),
                pl.BlockSpec((1, Dout), lambda i: (0, 0)),
            ],
            out_specs=pl.BlockSpec((M, Dout), lambda i: (0, 0)),
        ),
        compiler_params=pltpu.CompilerParams(
            dimension_semantics=("arbitrary",)),
    )(x, nl['w_t'], nl['b'], scoring['w_t'], scoring['b'])


# Plain single linear kernel (used only when add_nl_layer=False).
def _linear_kernel(x_ref, w_ref, b_ref, o_ref):
    y = (jnp.dot(x_ref[...], w_ref[...], preferred_element_type=jnp.float32)
         + b_ref[...])
    o_ref[...] = y.astype(o_ref.dtype)


def linear(x, params):
    M, K = x.shape
    Dout = params['w_t'].shape[1]
    return pl.pallas_call(
        _linear_kernel,
        out_shape=jax.ShapeDtypeStruct((M, Dout), jnp.float32),
        grid_spec=pltpu.PrefetchScalarGridSpec(
            num_scalar_prefetch=0,
            grid=(1,),
            in_specs=[
                pl.BlockSpec((M, K), lambda i: (0, 0)),
                pl.BlockSpec((K, Dout), lambda i: (0, 0)),
                pl.BlockSpec((1, Dout), lambda i: (0, 0)),
            ],
            out_specs=pl.BlockSpec((M, Dout), lambda i: (0, 0)),
        ),
        compiler_params=pltpu.CompilerParams(
            dimension_semantics=("arbitrary",)),
    )(x, params['w_t'], params['b'])


# ---------------------------------------------------------------------------
# Dilated-RNN glue (reshapes in JAX, LSTM sequence fused in one Pallas kernel).
# TODO(synk): move the strided phase-split / window gather into the kernels
#             via scalar-prefetch index_maps if num_series scales up.
# ---------------------------------------------------------------------------
def drnn_layer(inputs, cell, rate):
    n_steps, batch, d = inputs.shape
    dseq = -(-n_steps // rate)
    pad = dseq * rate - n_steps
    if pad > 0:
        inputs = jnp.concatenate(
            [inputs, jnp.zeros((pad, batch, d), inputs.dtype)], axis=0)
    # phase-split: concat the `rate` strided sub-sequences along batch
    dilated = jnp.concatenate([inputs[j::rate] for j in range(rate)], axis=1)
    dil_out = lstm_sequence(dilated, cell)            # (dseq, rate*batch, H)
    H = dil_out.shape[-1]
    interleaved = dil_out.reshape(dseq, rate, batch, H).reshape(
        dseq * rate, batch, H)
    return interleaved[:n_steps]


def residual_drnn(data, groups):
    inp = data
    out = data
    for gi, group in enumerate(groups):
        residual = inp
        out = inp
        for cell, rate in zip(group['cells'], group['dilations']):
            out = drnn_layer(out, cell, rate)
        if gi > 0:
            out = out + residual
        inp = out
    return out


def series_forward(data, params, cfg):
    data = residual_drnn(data, params['drnn_groups'])     # (W, N, H)
    W, N, H = data.shape
    flat = data.reshape(W * N, H)
    if cfg.add_nl_layer:
        flat = mlp_nl_scoring(flat, params['nl_layer'], params['scoring'])
    else:
        flat = linear(flat, params['scoring'])
    return flat.reshape(W, N, cfg.output_window_size)


# ---------------------------------------------------------------------------
# Full ESRNN forward (output_prediction=False path).
# TODO(synk): output_prediction=True hold-out prediction branch.
# ---------------------------------------------------------------------------
def esrnn_forward(x, params, cfg):
    T, N = x.shape
    xt = x.T                                              # (N, T), torch's xt

    levs_tm, seas_tm = es_smoothing(
        x.astype(jnp.float32),
        params['init_lev_sms'], params['init_seas_sms'],
        params['init_seasonalities_tm'])
    levs_stacked = levs_tm.T                              # (N, T)
    seasonalities_stacked = seas_tm.T                     # (N, T + seasonality)

    ows, iws, seas = (cfg.output_window_size, cfg.input_window_size,
                      cfg.seasonality)
    if ows > seas:
        start = seasonalities_stacked.shape[1] - ows + seas
        seasonalities_stacked = jnp.concatenate(
            [seasonalities_stacked, seasonalities_stacked[:, start:]], axis=1)

    # rolling input windows (gather glue)
    W = T - iws + 1
    i_idx = jnp.arange(iws - 1, T)                                    # (W,)
    col_idx = (i_idx - (iws - 1))[:, None] + jnp.arange(iws)[None, :]  # (W,iws)
    xt_win = xt[:, col_idx]                        # (N, W, iws)
    seas_win = seasonalities_stacked[:, col_idx]   # (N, W, iws)
    lev_i = levs_stacked[:, i_idx]                 # (N, W)
    norm = (xt_win / seas_win) / lev_i[:, :, None]
    norm = jnp.transpose(norm, (1, 0, 2))          # (W, N, iws)
    window_input = jnp.concatenate(
        [norm, jnp.ones((W, N, 1), norm.dtype)], axis=2)   # (W, N, iws+1)
    window_input = jnp.nan_to_num(window_input, nan=0.0)

    network_pred = series_forward(window_input, params, cfg)   # (W, N, ows)
    out_fcst_mean = network_pred[:, :, 1]                      # (W, N)
    # fc is a (W,N)x(N,output_dim) ~600-FLOP matmul: kernel-launch overhead
    # would dominate, so it stays in plain XLA.
    fc = params['fc']
    out_series_mean = (
        jnp.dot(jnp.maximum(out_fcst_mean, 0.0), fc['w_t']) + fc['b']
    ).reshape(-1)                                              # (W*output_dim,)
    pad_len = T - out_series_mean.shape[0]
    out_pad = jnp.concatenate(
        [jnp.full((pad_len,), out_series_mean[0], out_series_mean.dtype),
         out_series_mean]).reshape(-1, 1)
    return out_pad


# ---------------------------------------------------------------------------
# Deterministic parameter init (mirrors torch default inits, fixed PRNG key).
# ---------------------------------------------------------------------------
def init_lstm_params(key, in_dim, hidden):
    k = 1.0 / math.sqrt(hidden)
    k0, k1, k2, k3 = jax.random.split(key, 4)
    w_ih = jax.random.uniform(k0, (4 * hidden, in_dim), jnp.float32, -k, k)
    w_hh = jax.random.uniform(k1, (4 * hidden, hidden), jnp.float32, -k, k)
    b_ih = jax.random.uniform(k2, (4 * hidden,), jnp.float32, -k, k)
    b_hh = jax.random.uniform(k3, (4 * hidden,), jnp.float32, -k, k)
    # pre-concatenated weight for the single fused gate matmul [x (+) h] @ W
    w_cat = jnp.concatenate([w_ih.T, w_hh.T], axis=0)   # (in_dim+hidden, 4H)
    return dict(w_cat=w_cat, b=(b_ih + b_hh).reshape(1, -1))


def init_linear_params(key, in_dim, out_dim):
    k = 1.0 / math.sqrt(in_dim)
    k0, k1 = jax.random.split(key)
    w = jax.random.uniform(k0, (out_dim, in_dim), jnp.float32, -k, k)
    b = jax.random.uniform(k1, (out_dim,), jnp.float32, -k, k)
    return dict(w_t=w.T, b=b.reshape(1, -1))


def init_esrnn_params(key, cfg):
    N = cfg.num_series
    params = {
        'init_lev_sms': jnp.full((1, N), cfg.alpha_smoothing, jnp.float32),
        'init_seas_sms': jnp.full((1, N), cfg.alpha_smoothing, jnp.float32),
        'init_seasonalities_tm': jnp.full((cfg.seasonality, N),
                                          cfg.alpha_smoothing, jnp.float32),
    }
    keys = iter(jax.random.split(key, 32))
    groups = []
    for gi, dil_group in enumerate(cfg.dilations):
        in_size = (cfg.input_window_size + 1) if gi == 0 else cfg.state_hsize
        cells = []
        for li in range(len(dil_group)):
            cell_in = in_size if li == 0 else cfg.state_hsize
            cells.append(init_lstm_params(next(keys), cell_in, cfg.state_hsize))
        groups.append(dict(cells=cells, dilations=list(dil_group)))
    params['drnn_groups'] = groups
    params['nl_layer'] = init_linear_params(next(keys), cfg.state_hsize,
                                            cfg.state_hsize)
    params['scoring'] = init_linear_params(next(keys), cfg.state_hsize,
                                           cfg.output_window_size)
    params['fc'] = init_linear_params(next(keys), cfg.num_series,
                                      cfg.output_dim)
    return params


if __name__ == "__main__":
    cfg = SimpleNamespace(
        input_dim=1, hidden_dim=16, num_layers=1, output_dim=1,
        dropout_prob=0.0, num_series=4, dilations=[[1, 2], [4]],
        seasonality=4, alpha_smoothing=0.5, beta_smoothing=0.1,
        state_hsize=32, no_trend=True, input_window_size=6,
        output_window_size=8, add_nl_layer=True,
        multiplicative_seasonality=True, output_prediction=False)
    T = 24

    key = jax.random.PRNGKey(0)
    kx, kp = jax.random.split(key)
    # strictly positive series (ES smoothing divides by levels/seasonalities)
    x = jax.random.uniform(kx, (T, cfg.num_series), jnp.float32,
                           minval=0.5, maxval=1.5)
    params = init_esrnn_params(kp, cfg)

    out = esrnn_forward(x, params, cfg)
    out = jax.block_until_ready(out)
    assert out.shape == (T, 1), out.shape
    assert bool(jnp.all(jnp.isfinite(out)))
    print("KERNEL_OK")
</pallas_src>

<mosaic_0001>
module attributes {stable_mosaic.version = 11 : i64} {
  func.func @_es_kernel(%arg0: i32, %arg1: memref<24x4xf32, #tpu.memory_space<vmem>>, %arg2: memref<1x4xf32, #tpu.memory_space<vmem>>, %arg3: memref<1x4xf32, #tpu.memory_space<vmem>>, %arg4: memref<4x4xf32, #tpu.memory_space<vmem>>, %arg5: memref<24x4xf32, #tpu.memory_space<vmem>>, %arg6: memref<28x4xf32, #tpu.memory_space<vmem>>) attributes {dimension_semantics = [#tpu.dimension_semantics<arbitrary>], iteration_bounds = array<i64: 1>, scalar_prefetch = 0 : i64, scratch_operands = 0 : i64, tpu.core_type = #tpu.core_type<tc>, window_params = [{pipeline_mode = #tpu.pipeline_mode<synchronous>, transform_indices = @transform_0, window_bounds = array<i64: 24, 4>}, {pipeline_mode = #tpu.pipeline_mode<synchronous>, transform_indices = @transform_1, window_bounds = array<i64: 1, 4>}, {pipeline_mode = #tpu.pipeline_mode<synchronous>, transform_indices = @transform_2, window_bounds = array<i64: 1, 4>}, {pipeline_mode = #tpu.pipeline_mode<synchronous>, transform_indices = @transform_3, window_bounds = array<i64: 4, 4>}, {pipeline_mode = #tpu.pipeline_mode<synchronous>, transform_indices = @transform_4, window_bounds = array<i64: 24, 4>}, {pipeline_mode = #tpu.pipeline_mode<synchronous>, transform_indices = @transform_5, window_bounds = array<i64: 28, 4>}]} {
    %c0 = arith.constant 0 : index
    %c0_0 = arith.constant 0 : index
    %0 = vector.load %arg2[%c0, %c0_0] : memref<1x4xf32, #tpu.memory_space<vmem>>, vector<1x4xf32>
    %cst = arith.constant 0.000000e+00 : f32
    %1 = vector.broadcast %cst : f32 to vector<1x4xf32>
    %2 = arith.subf %1, %0 : vector<1x4xf32>
    %3 = math.exp %2 : vector<1x4xf32>
    %cst_1 = arith.constant 1.000000e+00 : f32
    %4 = vector.broadcast %cst_1 : f32 to vector<1x4xf32>
    %5 = arith.addf %4, %3 : vector<1x4xf32>
    %6 = tpu.reciprocal %5 {approx = true} : vector<1x4xf32> -> vector<1x4xf32>
    %c0_2 = arith.constant 0 : index
    %c0_3 = arith.constant 0 : index
    %7 = vector.load %arg3[%c0_2, %c0_3] : memref<1x4xf32, #tpu.memory_space<vmem>>, vector<1x4xf32>
    %cst_4 = arith.constant 0.000000e+00 : f32
    %8 = vector.broadcast %cst_4 : f32 to vector<1x4xf32>
    %9 = arith.subf %8, %7 : vector<1x4xf32>
    %10 = math.exp %9 : vector<1x4xf32>
    %cst_5 = arith.constant 1.000000e+00 : f32
    %11 = vector.broadcast %cst_5 : f32 to vector<1x4xf32>
    %12 = arith.addf %11, %10 : vector<1x4xf32>
    %13 = tpu.reciprocal %12 {approx = true} : vector<1x4xf32> -> vector<1x4xf32>
    %c0_6 = arith.constant 0 : index
    %c0_7 = arith.constant 0 : index
    %14 = vector.load %arg4[%c0_6, %c0_7] : memref<4x4xf32, #tpu.memory_space<vmem>>, vector<4x4xf32>
    %15 = math.exp %14 : vector<4x4xf32>
    %c0_8 = arith.constant 0 : index
    %c0_9 = arith.constant 0 : index
    %16 = vector.load %arg6[%c0_8, %c0_9] : memref<28x4xf32, #tpu.memory_space<vmem>>, vector<4x4xf32>
    tpu.vector_store %arg6[%c0_8, %c0_9], %15 {strides = array<i32>} : memref<28x4xf32, #tpu.memory_space<vmem>>, vector<4x4xf32>,
    %17 = vector.extract_strided_slice %15 {offsets = [0, 0], sizes = [1, 4], strides = [1, 1]} : vector<4x4xf32> to vector<1x4xf32>
    %c4 = arith.constant 4 : index
    %c0_10 = arith.constant 0 : index
    %18 = vector.load %arg6[%c4, %c0_10] : memref<28x4xf32, #tpu.memory_space<vmem>>, vector<1x4xf32>
    tpu.vector_store %arg6[%c4, %c0_10], %17 {strides = array<i32>} : memref<28x4xf32, #tpu.memory_space<vmem>>, vector<1x4xf32>,
    %c0_11 = arith.constant 0 : index
    %c0_12 = arith.constant 0 : index
    %19 = vector.load %arg1[%c0_11, %c0_12] : memref<24x4xf32, #tpu.memory_space<vmem>>, vector<1x4xf32>
    %20 = tpu.reciprocal %17 {approx = true} : vector<1x4xf32> -> vector<1x4xf32>
    %21 = arith.mulf %19, %20 : vector<1x4xf32>
    %c0_13 = arith.constant 0 : index
    %c0_14 = arith.constant 0 : index
    %22 = vector.load %arg5[%c0_13, %c0_14] : memref<24x4xf32, #tpu.memory_space<vmem>>, vector<1x4xf32>
    tpu.vector_store %arg5[%c0_13, %c0_14], %21 {strides = array<i32>} : memref<24x4xf32, #tpu.memory_space<vmem>>, vector<1x4xf32>,
    %c1_i32 = arith.constant 1 : i32
    %c23_i32 = arith.constant 23 : i32
    %23 = arith.addi %c1_i32, %c23_i32 : i32
    %c1_i32_15 = arith.constant 1 : i32
    %24 = scf.for %arg7 = %c1_i32 to %23 step %c1_i32_15 iter_args(%arg8 = %21) -> (vector<1x4xf32>)  : i32 {
      %25 = arith.index_cast %arg7 : i32 to index
      %c0_17 = arith.constant 0 : index
      %26 = vector.load %arg1[%25, %c0_17] : memref<24x4xf32, #tpu.memory_space<vmem>>, vector<1x4xf32>
      %27 = arith.index_cast %arg7 : i32 to index
      %c0_18 = arith.constant 0 : index
      %28 = vector.load %arg6[%27, %c0_18] : memref<28x4xf32, #tpu.memory_space<vmem>>, vector<1x4xf32>
      %29 = tpu.reciprocal %28 {approx = true} : vector<1x4xf32> -> vector<1x4xf32>
      %30 = arith.mulf %26, %29 : vector<1x4xf32>
      %31 = arith.mulf %6, %30 : vector<1x4xf32>
      %cst_19 = arith.constant 1.000000e+00 : f32
      %32 = vector.broadcast %cst_19 : f32 to vector<1x4xf32>
      %33 = arith.subf %32, %6 : vector<1x4xf32>
      %34 = arith.mulf %33, %arg8 : vector<1x4xf32>
      %35 = arith.addf %31, %34 : vector<1x4xf32>
      %36 = arith.index_cast %arg7 : i32 to index
      %c0_20 = arith.constant 0 : index
      %37 = vector.load %arg5[%36, %c0_20] : memref<24x4xf32, #tpu.memory_space<vmem>>, vector<1x4xf32>
      tpu.vector_store %arg5[%36, %c0_20], %35 {strides = array<i32>} : memref<24x4xf32, #tpu.memory_space<vmem>>, vector<1x4xf32>,
      %38 = tpu.reciprocal %35 {approx = true} : vector<1x4xf32> -> vector<1x4xf32>
      %39 = arith.mulf %26, %38 : vector<1x4xf32>
      %40 = arith.mulf %13, %39 : vector<1x4xf32>
      %cst_21 = arith.constant 1.000000e+00 : f32
      %41 = vector.broadcast %cst_21 : f32 to vector<1x4xf32>
      %42 = arith.subf %41, %13 : vector<1x4xf32>
      %43 = arith.mulf %42, %28 : vector<1x4xf32>
      %44 = arith.addf %40, %43 : vector<1x4xf32>
      %c4_i32 = arith.constant 4 : i32
      %45 = arith.addi %arg7, %c4_i32 : i32
      %46 = arith.index_cast %45 : i32 to index
      %c0_22 = arith.constant 0 : index
      %47 = vector.load %arg6[%46, %c0_22] : memref<28x4xf32, #tpu.memory_space<vmem>>, vector<1x4xf32>
      tpu.vector_store %arg6[%46, %c0_22], %44 {strides = array<i32>} : memref<28x4xf32, #tpu.memory_space<vmem>>, vector<1x4xf32>,
      scf.yield %35 : vector<1x4xf32>
    }
    %c23_i32_16 = arith.constant 23 : i32
    return
  }
  func.func @transform_0(%arg0: i32) -> (i32, i32) {
    %c0_i32 = arith.constant 0 : i32
    %c0_i32_0 = arith.constant 0 : i32
    %c0_i32_1 = arith.constant 0 : i32
    return %c0_i32, %c0_i32_0 : i32, i32
  }
  func.func @transform_1(%arg0: i32) -> (i32, i32) {
    %c0_i32 = arith.constant 0 : i32
    %c0_i32_0 = arith.constant 0 : i32
    %c0_i32_1 = arith.constant 0 : i32
    return %c0_i32, %c0_i32_0 : i32, i32
  }
  func.func @transform_2(%arg0: i32) -> (i32, i32) {
    %c0_i32 = arith.constant 0 : i32
    %c0_i32_0 = arith.constant 0 : i32
    %c0_i32_1 = arith.constant 0 : i32
    return %c0_i32, %c0_i32_0 : i32, i32
  }
  func.func @transform_3(%arg0: i32) -> (i32, i32) {
    %c0_i32 = arith.constant 0 : i32
    %c0_i32_0 = arith.constant 0 : i32
    %c0_i32_1 = arith.constant 0 : i32
    return %c0_i32, %c0_i32_0 : i32, i32
  }
  func.func @transform_4(%arg0: i32) -> (i32, i32) {
    %c0_i32 = arith.constant 0 : i32
    %c0_i32_0 = arith.constant 0 : i32
    %c0_i32_1 = arith.constant 0 : i32
    return %c0_i32, %c0_i32_0 : i32, i32
  }
  func.func @transform_5(%arg0: i32) -> (i32, i32) {
    %c0_i32 = arith.constant 0 : i32
    %c0_i32_0 = arith.constant 0 : i32
    %c0_i32_1 = arith.constant 0 : i32
    return %c0_i32, %c0_i32_0 : i32, i32
  }
}

</mosaic_0001>

<llo_original>
// kernel: tpu_custom_call.1
$region0: #{tpu_custom_call.1}
  #allocation0 [shape = 'u32[]', space=smem, size = 0x4, offset = 0x4, fixed_abs, tag = 'smem constant byte address 0x4 - core index']
  #allocation1 [shape = 'u32[144,128]{1,0:T(1,128)}', space=vmem, size = 0x12000, scoped, tag = 'internal scratch']
  %s0 = inlined_call_operand.vmem [shape: f32[24,4], index: 0, kind: input, shape index: {}]
  %s1 = inlined_call_operand.vmem [shape: f32[1,4], index: 1, kind: input, shape index: {}]
  %s2 = inlined_call_operand.vmem [shape: f32[1,4], index: 2, kind: input, shape index: {}]
  %s3 = inlined_call_operand.vmem [shape: f32[4,4], index: 3, kind: input, shape index: {}]
  %s4 = inlined_call_operand.vmem [shape: f32[24,4], index: 4, kind: output, shape index: {0}]
  %s5 = inlined_call_operand.vmem [shape: f32[28,4], index: 5, kind: output, shape index: {1}]
  %6 = xla_tuple %s4, %s5
  %s7 = sld [smem:[#allocation0]]
  $region41: #{tpu_custom_call.1} parent=0
    _
  %s9 = ssub.s32 1, %s7
  %s10 = scalar_select 0, %s9, %s7
  // Predicated region
  $region2: #{tpu_custom_call.1} parent=0 // pred_check
    _
  $region3: #{tpu_custom_call.1} parent=0 // pred_check_branch
    %12 = sbr.rel (0) target = $region5
  $region4: #{tpu_custom_call.1} parent=0 // pred_region
    _
  $region5: #{tpu_custom_call.1} parent=0 // pred_fallthru
    _
  // Predicated region
  $region6: #{tpu_custom_call.1} parent=0 // pred_check
    _
  $region7: #{tpu_custom_call.1} parent=0 // pred_check_branch
    %14 = sbr.rel (0) target = $region9
  $region8: #{tpu_custom_call.1} parent=0 // pred_region
    _
  $region9: #{tpu_custom_call.1} parent=0 // pred_fallthru
    _
  // Predicated region
  $region10: #{tpu_custom_call.1} parent=0 // pred_check
    _
  $region11: #{tpu_custom_call.1} parent=0 // pred_check_branch
    %16 = sbr.rel (0) target = $region13
  $region12: #{tpu_custom_call.1} parent=0 // pred_region
    _
  $region13: #{tpu_custom_call.1} parent=0 // pred_fallthru
    _
  // Predicated region
  $region14: #{tpu_custom_call.1} parent=0 // pred_check
    _
  $region15: #{tpu_custom_call.1} parent=0 // pred_check_branch
    %18 = sbr.rel (0) target = $region17
  $region16: #{tpu_custom_call.1} parent=0 // pred_region
    _
  $region17: #{tpu_custom_call.1} parent=0 // pred_fallthru
    _
  %v19 = vld [vmem:[%s1] sm:$0x1]
  %v20 = vsub.f32 0.0, %v19
  %v21 = vmul.f32 %v20, 1.442695
  %v22 = vpow.pop %v21
  %v23 = vadd.f32 %v22, 1.0
  %v24 = vrcp.pop %v23
  %v25 = vld [vmem:[%s2] sm:$0x1]
  %v26 = vsub.f32 0.0, %v25
  %v27 = vmul.f32 %v26, 1.442695
  %v28 = vpow.pop %v27
  %v29 = vadd.f32 %v28, 1.0
  %v30 = vrcp.pop %v29
  %v31 = vld [vmem:[%s3] sm:$0xf]
  %v32 = vmul.f32 %v31, 1.442695
  %v33 = vpow.pop %v32
  %vm34 = vcmask 27648
  %35 = vst.msk [vmem:[%s5] sm:$0xf] %vm34, %v33
  %vm36 = vcmask 24576
  %37 = vst.msk [vmem:[%s5 + $0x4] sm:$0x1] %vm36, %v33
  %v38 = vld [vmem:[%s0] sm:$0x1]
  %v39 = vrcp.pop %v33
  %v40 = vmul.f32 %v38, %v39
  %41 = vst.msk [vmem:[%s4] sm:$0x1] %vm36, %v40
  loop: start=1, step=1, limit=24
  $region18: #{tpu_custom_call.1} parent=0 // loop_pre_header
    _
  $region19: #{tpu_custom_call.1} parent=0 // loop_header
    %s43 = sphi 1, %s47
    %p44 = scmp.ge.s32.totalorder %s43, 24
    %v48 = vphi %v40, %v58
  $region20: #{tpu_custom_call.1} parent=0 // loop_header_branch
    %46 = sbr.rel (%p44) target = $region24
  $region21: #{tpu_custom_call.1} parent=0 // loop_body
    %s49 = scalar_lea.vmem %s0, %s43
    %v50 = vld [vmem:[%s49] sm:$0x1]
    %s51 = scalar_lea.vmem %s5, %s43
    %v52 = vld [vmem:[%s51] sm:$0x1]
    %v53 = vrcp.pop %v52
    %v54 = vmul.f32 %v50, %v53
    %v55 = vmul.f32 %v24, %v54
    %v56 = vsub.f32 1.0, %v24
    %v57 = vmul.f32 %v56, %v48
    %v58 = vadd.f32 %v55, %v57
    %s59 = scalar_lea.vmem %s4, %s43
    %60 = vst.msk [vmem:[%s59] sm:$0x1] %vm36, %v58
    %v61 = vrcp.pop %v58
    %v62 = vmul.f32 %v50, %v61
    %v63 = vmul.f32 %v30, %v62
    %v64 = vsub.f32 1.0, %v30
    %v65 = vmul.f32 %v64, %v52
    %v66 = vadd.f32 %v63, %v65
    %s67 = sadd.s32 %s43, 4
    %s68 = scalar_lea.vmem %s5, %s67
    %69 = vst.msk [vmem:[%s68] sm:$0x1] %vm36, %v66
  $region22: #{tpu_custom_call.1} parent=0 // loop_footer
    %s47 = sadd.s32 1, %s43
  $region23: #{tpu_custom_call.1} parent=0 // loop_footer_branch
    %42 = sbr.rel target = $region19
  $region24: #{tpu_custom_call.1} parent=0 // loop_exit
    _
  // Predicated region
  $region25: #{tpu_custom_call.1} parent=0 // pred_check
    _
  $region26: #{tpu_custom_call.1} parent=0 // pred_check_branch
    %71 = sbr.rel (0) target = $region28
  $region27: #{tpu_custom_call.1} parent=0 // pred_region
    _
  $region28: #{tpu_custom_call.1} parent=0 // pred_fallthru
    _
  // Predicated region
  $region29: #{tpu_custom_call.1} parent=0 // pred_check
    _
  $region30: #{tpu_custom_call.1} parent=0 // pred_check_branch
    %73 = sbr.rel (0) target = $region32
  $region31: #{tpu_custom_call.1} parent=0 // pred_region
    _
  $region32: #{tpu_custom_call.1} parent=0 // pred_fallthru
    _
  // Predicated region
  $region33: #{tpu_custom_call.1} parent=0 // pred_check
    _
  $region34: #{tpu_custom_call.1} parent=0 // pred_check_branch
    %75 = sbr.rel (0) target = $region36
  $region35: #{tpu_custom_call.1} parent=0 // pred_region
    _
  $region36: #{tpu_custom_call.1} parent=0 // pred_fallthru
    _
  // Predicated region
  $region37: #{tpu_custom_call.1} parent=0 // pred_check
    _
  $region38: #{tpu_custom_call.1} parent=0 // pred_check_branch
    %77 = sbr.rel (0) target = $region40
  $region39: #{tpu_custom_call.1} parent=0 // pred_region
    _
  $region40: #{tpu_custom_call.1} parent=0 // pred_fallthru
    _

</llo_original>
